<compile_context>
chip_gen: v7x
topology: tpu7x:2x2x1
jax: 0.10.0
libtpu: 0.0.40
codegen_flags: <defaults>
</compile_context>

<pallas_src>
import functools
import numpy as np

import jax
import jax.numpy as jnp
from jax.experimental import pallas as pl
from jax.experimental.pallas import tpu as pltpu


# --------------------------- compiler parameters ----------------------------

def _vmem_limit_bytes():
    cap = 64 * 1024 * 1024                 # conservative fallback (v7x physical VMEM)
    try:
        cap = int(pltpu.get_tpu_info().vmem_capacity_bytes)
    except Exception:
        pass
    return min((cap * 3) // 4, 96 * 1024 * 1024)   # 48 MiB on v7x, 96 MiB on v5e/v6e


_VMEM_LIMIT = _vmem_limit_bytes()


def _cparams(n_grid=1):
    return pltpu.CompilerParams(
        dimension_semantics=("parallel",) * n_grid,
        vmem_limit_bytes=_VMEM_LIMIT)


# ----------------------------- Pallas kernels -------------------------------

def _matmul_kernel(*refs, relu, has_add):
    if has_add:
        x_ref, w_ref, b_ref, a_ref, o_ref = refs
    else:
        x_ref, w_ref, b_ref, o_ref = refs
        a_ref = None
    acc = jnp.dot(x_ref[...], w_ref[...], preferred_element_type=jnp.float32)
    acc = acc + b_ref[...]
    if has_add:
        acc = acc + a_ref[...].astype(jnp.float32)
    if relu:
        acc = jnp.maximum(acc, 0.0)
    o_ref[...] = acc.astype(o_ref.dtype)


def matmul_bias(x, w, bias, relu=False, add=None, out_dtype=jnp.bfloat16):
    """out = x @ w + bias (+ add) (+ ReLU).  x:(M,K), w:(K,N); BN scale pre-folded."""
    M, K = x.shape
    N = w.shape[1]
    tm = M if M <= 256 else 256
    grid = (pl.cdiv(M, tm),)
    in_specs = [pl.BlockSpec((tm, K), lambda i: (i, 0)),
                pl.BlockSpec((K, N), lambda i: (0, 0)),
                pl.BlockSpec((1, N), lambda i: (0, 0))]
    args = [x.astype(jnp.bfloat16), w.astype(jnp.bfloat16),
            bias.reshape(1, N).astype(jnp.float32)]
    if add is not None:
        in_specs.append(pl.BlockSpec((tm, N), lambda i: (i, 0)))
        args.append(add.astype(jnp.bfloat16))
    kern = functools.partial(_matmul_kernel, relu=relu, has_add=add is not None)
    return pl.pallas_call(
        kern,
        out_shape=jax.ShapeDtypeStruct((M, N), out_dtype),
        grid=grid,
        in_specs=in_specs,
        out_specs=pl.BlockSpec((tm, N), lambda i: (i, 0)),
        compiler_params=_cparams(1),
    )(*args)


def _sepconv_kernel(*refs, H, W, relu_in, relu_out, has_skip):
    """Fused: [ReLU] -> depthwise 3x3 (s1,p1) -> pointwise matmul + bias
    [-> +skip] [-> ReLU].  One batch element per grid step."""
    if has_skip:
        xp_ref, dw_ref, pw_ref, b_ref, skip_ref, o_ref, y_scr = refs
    else:
        xp_ref, dw_ref, pw_ref, b_ref, o_ref, y_scr = refs
        skip_ref = None
    x = xp_ref[0].astype(jnp.float32)                     # (H+2, W+2, Cin)
    if relu_in:
        x = jnp.maximum(x, 0.0)                           # ReLU hoisted out of tap loop
    acc = x[0:H, 0:W, :] * dw_ref[0, :].astype(jnp.float32).reshape(1, 1, -1)
    for t in range(1, 9):
        dy, dx = divmod(t, 3)
        wt = dw_ref[t, :].astype(jnp.float32).reshape(1, 1, -1)
        acc = acc + x[dy:dy + H, dx:dx + W, :] * wt
    accb = acc.astype(jnp.bfloat16)
    for h in range(H):                                    # stage depthwise result in VMEM
        y_scr[h * W:(h + 1) * W, :] = accb[h]
    out = jnp.dot(y_scr[...], pw_ref[...], preferred_element_type=jnp.float32)
    out = out + b_ref[...]
    if has_skip:
        out = out + skip_ref[0].astype(jnp.float32)
    if relu_out:
        out = jnp.maximum(out, 0.0)
    o_ref[0] = out.astype(o_ref.dtype)


def sep_conv_fused(x, dw, pw, bias, relu_in=False, relu_out=False, skip=None):
    """SeparableConv2d(3x3,s1,p1) + folded BN (+ residual) in ONE pallas_call.
    x:(N,H,W,Cin) bf16, dw:(9,Cin) f32, pw:(Cin,Cout) bf16 (scale folded)."""
    N, H, W, Cin = x.shape
    Cout = pw.shape[1]
    xp = jnp.pad(x, ((0, 0), (1, 1), (1, 1), (0, 0)))
    in_specs = [pl.BlockSpec((1, H + 2, W + 2, Cin), lambda n: (n, 0, 0, 0)),
                pl.BlockSpec((9, Cin), lambda n: (0, 0)),
                pl.BlockSpec((Cin, Cout), lambda n: (0, 0)),
                pl.BlockSpec((1, Cout), lambda n: (0, 0))]
    args = [xp, dw.astype(jnp.float32), pw.astype(jnp.bfloat16),
            bias.reshape(1, Cout).astype(jnp.float32)]
    if skip is not None:
        in_specs.append(pl.BlockSpec((1, H * W, Cout), lambda n: (n, 0, 0)))
        args.append(skip.reshape(N, H * W, Cout).astype(jnp.bfloat16))
    kern = functools.partial(_sepconv_kernel, H=H, W=W, relu_in=relu_in,
                             relu_out=relu_out, has_skip=skip is not None)
    out = pl.pallas_call(
        kern,
        out_shape=jax.ShapeDtypeStruct((N, H * W, Cout), jnp.bfloat16),
        grid=(N,),
        in_specs=in_specs,
        out_specs=pl.BlockSpec((1, H * W, Cout), lambda n: (n, 0, 0)),
        scratch_shapes=[pltpu.VMEM((H * W, Cin), jnp.bfloat16)],
        compiler_params=_cparams(1),
    )(*args)
    return out.reshape(N, H, W, Cout)


def _maxpool_kernel(xp_ref, o_ref, *, H, W, Ho):
    x = xp_ref[0].astype(jnp.float32)                     # (H+2, W+2, C), -inf padded
    m = x[0:H, 0:W, :]
    for t in range(1, 9):
        dy, dx = divmod(t, 3)
        m = jnp.maximum(m, x[dy:dy + H, dx:dx + W, :])
    for i in range(Ho):                                   # stride-2 decimation along H
        o_ref[0, i] = m[2 * i].astype(o_ref.dtype)


def maxpool3x3_s2(x):
    """MaxPool2d(kernel=3, stride=2, padding=1), NHWC, taps computed in-kernel."""
    N, H, W, C = x.shape
    Ho = (H - 1) // 2 + 1
    Wo = (W - 1) // 2 + 1
    xp = jnp.pad(x, ((0, 0), (1, 1), (1, 1), (0, 0)), constant_values=-jnp.inf)
    kern = functools.partial(_maxpool_kernel, H=H, W=W, Ho=Ho)
    y = pl.pallas_call(
        kern,
        out_shape=jax.ShapeDtypeStruct((N, Ho, W, C), x.dtype),
        grid=(N,),
        in_specs=[pl.BlockSpec((1, H + 2, W + 2, C), lambda n: (n, 0, 0, 0))],
        out_specs=pl.BlockSpec((1, Ho, W, C), lambda n: (n, 0, 0, 0)),
        compiler_params=_cparams(1),
    )(xp)
    # TODO(synk): W-axis decimation stays as XLA glue (could move in-kernel via strided ref load).
    return y[:, :, ::2, :][:, :, :Wo, :]


def _relu_avgpool_kernel(x_ref, o_ref, *, inv_hw):
    x = jnp.maximum(x_ref[0].astype(jnp.float32), 0.0)    # (HW, C)
    o_ref[0] = (jnp.sum(x, axis=0, keepdims=True) * inv_hw).astype(o_ref.dtype)


def relu_avgpool(x):
    """ReLU + adaptive_avg_pool2d((1,1)) + flatten.  (N,H,W,C) -> (N,C) f32."""
    N, H, W, C = x.shape
    xr = x.reshape(N, H * W, C)
    kern = functools.partial(_relu_avgpool_kernel, inv_hw=1.0 / float(H * W))
    out = pl.pallas_call(
        kern,
        out_shape=jax.ShapeDtypeStruct((N, 1, C), jnp.float32),
        grid=(N,),
        in_specs=[pl.BlockSpec((1, H * W, C), lambda n: (n, 0, 0))],
        out_specs=pl.BlockSpec((1, 1, C), lambda n: (n, 0, 0)),
        compiler_params=_cparams(1),
    )(xr)
    return out.reshape(N, C)


# ----------------------------- composite layers ------------------------------

def conv2d_im2col(x, w, bias, kh, kw, stride=1, pad=0, relu=False):
    """Dense conv + folded BN + optional ReLU via im2col + tiled Pallas matmul.
    x: NHWC bf16, w: (kh*kw*Cin, Cout) bf16 with BN scale folded in."""
    # TODO(synk): tap extraction is XLA glue outside the kernel (only conv1/conv2 use it).
    N, H, W, C = x.shape
    Cout = w.shape[1]
    if pad > 0:
        x = jnp.pad(x, ((0, 0), (pad, pad), (pad, pad), (0, 0)))
    Hp, Wp = x.shape[1], x.shape[2]
    Ho = (Hp - kh) // stride + 1
    Wo = (Wp - kw) // stride + 1
    cols = []
    for dy in range(kh):
        for dx in range(kw):
            cols.append(x[:, dy:dy + (Ho - 1) * stride + 1:stride,
                             dx:dx + (Wo - 1) * stride + 1:stride, :])
    patches = jnp.concatenate(cols, axis=-1).reshape(N * Ho * Wo, kh * kw * C)
    out = matmul_bias(patches, w, bias, relu=relu)
    return out.reshape(N, Ho, Wo, Cout)


def xception_block(x, blk):
    inp = x
    h = x
    seps = blk['seps']
    fuse_residual_into_last_sep = blk['skip'] is None      # identity skip path
    for si, sep in enumerate(seps):
        skip_arg = inp if (fuse_residual_into_last_sep and si == len(seps) - 1) else None
        h = sep_conv_fused(h, sep['dw'], sep['pw'], sep['bias'],
                           relu_in=sep['relu_in'], relu_out=False, skip=skip_arg)
    if blk['maxpool']:
        h = maxpool3x3_s2(h)
    if blk['skip'] is not None:
        sk = blk['skip']
        s = sk['stride']
        skin = inp[:, ::s, ::s, :] if s != 1 else inp
        N, Ho, Wo, Cin = skin.shape
        Cout = sk['w'].shape[1]
        # 1x1 skip conv + folded BN with the residual add fused into its epilogue.
        out = matmul_bias(skin.reshape(N * Ho * Wo, Cin), sk['w'], sk['bias'],
                          relu=False, add=h.reshape(N * Ho * Wo, Cout))
        return out.reshape(N, Ho, Wo, Cout)
    return h


# ------------------------- deterministic parameters --------------------------

_param_key = [jax.random.PRNGKey(1)]


def _nk():
    _param_key[0], sub = jax.random.split(_param_key[0])
    return sub


def bn_params(c, eps=1e-5):
    gamma = 1.0 + 0.1 * jax.random.normal(_nk(), (c,), jnp.float32)
    beta = 0.1 * jax.random.normal(_nk(), (c,), jnp.float32)
    mean = 0.1 * jax.random.normal(_nk(), (c,), jnp.float32)
    var = 1.0 + 0.1 * jnp.abs(jax.random.normal(_nk(), (c,), jnp.float32))
    scale = gamma / jnp.sqrt(var + eps)
    bias = beta - mean * scale
    return scale, bias


def dense_conv_params(kh, kw, cin, cout):
    fan_in = kh * kw * cin
    w = jax.random.normal(_nk(), (kh, kw, cin, cout), jnp.float32) / np.sqrt(fan_in)
    scale, bias = bn_params(cout)
    wf = (w * scale.reshape(1, 1, 1, cout)).reshape(kh * kw * cin, cout)
    return wf.astype(jnp.bfloat16), bias


def sep_conv_params(cin, cout, relu_in):
    dw = jax.random.normal(_nk(), (9, cin), jnp.float32) / 3.0
    pw = jax.random.normal(_nk(), (cin, cout), jnp.float32) / np.sqrt(cin)
    scale, bias = bn_params(cout)
    return dict(relu_in=relu_in, dw=dw,
                pw=(pw * scale.reshape(1, cout)).astype(jnp.bfloat16), bias=bias)


def skip_conv_params(cin, cout, stride):
    w = jax.random.normal(_nk(), (cin, cout), jnp.float32) / np.sqrt(cin)
    scale, bias = bn_params(cout)
    return dict(w=(w * scale.reshape(1, cout)).astype(jnp.bfloat16),
                bias=bias, stride=stride)


def make_block(cin, cout, reps, stride, start_with_relu, grow_first):
    # Mirror torch Block.__init__ sequencing exactly.
    sep_specs = []
    filters = cin
    if grow_first:
        sep_specs.append([True, cin, cout])
        filters = cout
    for _ in range(reps - 1):
        sep_specs.append([True, filters, filters])
    if not grow_first:
        sep_specs.append([True, cin, cout])
    if not start_with_relu:
        sep_specs[0][0] = False
    blk = {'seps': [sep_conv_params(ci, co, relu_in)
                    for relu_in, ci, co in sep_specs],
           'maxpool': stride != 1}
    if cout != cin or stride != 1:
        blk['skip'] = skip_conv_params(cin, cout, stride)
    else:
        blk['skip'] = None
    return blk


def build_params(num_out_classes=2):
    p = {'num_classes': num_out_classes}
    p['conv1_w'], p['conv1_b'] = dense_conv_params(3, 3, 3, 32)
    p['conv2_w'], p['conv2_b'] = dense_conv_params(3, 3, 32, 64)
    blocks = [make_block(64, 128, 2, 2, start_with_relu=False, grow_first=True),
              make_block(128, 256, 2, 2, True, True),
              make_block(256, 728, 2, 2, True, True)]
    for _ in range(8):                       # block4 .. block11
        blocks.append(make_block(728, 728, 3, 1, True, True))
    blocks.append(make_block(728, 1024, 2, 2, True, False))   # block12
    p['blocks'] = blocks
    c3 = sep_conv_params(1024, 1536, relu_in=False)
    p['conv3_dw'], p['conv3_pw'], p['conv3_b'] = c3['dw'], c3['pw'], c3['bias']
    c4 = sep_conv_params(1536, 2048, relu_in=False)
    p['conv4_dw'], p['conv4_pw'], p['conv4_b'] = c4['dw'], c4['pw'], c4['bias']
    # final Linear; pad Cout up to 128 lanes so the matmul store stays unmasked.
    npad = 128
    fc_w = jax.random.normal(_nk(), (2048, num_out_classes), jnp.float32) / np.sqrt(2048)
    fc_b = 0.1 * jax.random.normal(_nk(), (num_out_classes,), jnp.float32)
    p['fc_w'] = jnp.zeros((2048, npad), jnp.float32).at[:, :num_out_classes].set(
        fc_w).astype(jnp.bfloat16)
    p['fc_b'] = jnp.zeros((npad,), jnp.float32).at[:num_out_classes].set(fc_b)
    return p


# ---------------------------------- forward ----------------------------------

def transfer_model_forward(x_nchw, p):
    """TransferModel.forward (return_fea=False): returns logits (N, num_out_classes)."""
    x = jnp.transpose(x_nchw, (0, 2, 3, 1)).astype(jnp.bfloat16)   # NCHW -> NHWC

    # fea_part1: conv1/bn1/relu, conv2/bn2/relu
    x = conv2d_im2col(x, p['conv1_w'], p['conv1_b'], 3, 3, stride=2, pad=0, relu=True)
    x = conv2d_im2col(x, p['conv2_w'], p['conv2_b'], 3, 3, stride=1, pad=0, relu=True)

    # fea_part2..4 + block12
    for blk in p['blocks']:
        x = xception_block(x, blk)

    # conv3/bn3/relu, conv4/bn4
    x = sep_conv_fused(x, p['conv3_dw'], p['conv3_pw'], p['conv3_b'],
                       relu_in=False, relu_out=True)
    x = sep_conv_fused(x, p['conv4_dw'], p['conv4_pw'], p['conv4_b'],
                       relu_in=False, relu_out=False)

    # classifier: relu -> global avg pool -> flatten -> last_linear (Dropout p=0 = identity)
    feat = relu_avgpool(x)                                          # (N, 2048) f32
    logits = matmul_bias(feat.astype(jnp.bfloat16), p['fc_w'], p['fc_b'],
                         relu=False, out_dtype=jnp.float32)
    return logits[:, :p['num_classes']]


# ------------------------------------ main ------------------------------------

if __name__ == "__main__":
    params = build_params(num_out_classes=2)
    key = jax.random.PRNGKey(0)
    x = jax.random.normal(key, (2, 3, 32, 32), jnp.float32)   # NCHW, like PyTorch
    out = transfer_model_forward(x, params)
    out = jax.block_until_ready(out)
    assert out.shape == (2, 2), out.shape
    assert bool(jnp.all(jnp.isfinite(out)))
    print("KERNEL_OK")
</pallas_src>

<mosaic_0001>
module attributes {stable_mosaic.version = 11 : i64} {
  func.func @_matmul_kernel(%arg0: i32, %arg1: memref<256x27xbf16, #tpu.memory_space<vmem>>, %arg2: memref<27x32xbf16, #tpu.memory_space<vmem>>, %arg3: memref<1x32xf32, #tpu.memory_space<vmem>>, %arg4: memref<256x32xbf16, #tpu.memory_space<vmem>>) attributes {dimension_semantics = [#tpu.dimension_semantics<parallel>], iteration_bounds = array<i64: 2>, scalar_prefetch = 0 : i64, scratch_operands = 0 : i64, tpu.core_type = #tpu.core_type<tc>, window_params = [{transform_indices = @transform_0, window_bounds = array<i64: 256, 27>}, {pipeline_mode = #tpu.pipeline_mode<synchronous>, transform_indices = @transform_1, window_bounds = array<i64: 27, 32>}, {pipeline_mode = #tpu.pipeline_mode<synchronous>, transform_indices = @transform_2, window_bounds = array<i64: 1, 32>}, {transform_indices = @transform_3, window_bounds = array<i64: 256, 32>}]} {
    %c0 = arith.constant 0 : index
    %c0_0 = arith.constant 0 : index
    %0 = vector.load %arg1[%c0, %c0_0] : memref<256x27xbf16, #tpu.memory_space<vmem>>, vector<256x27xbf16>
    %c0_1 = arith.constant 0 : index
    %c0_2 = arith.constant 0 : index
    %1 = vector.load %arg2[%c0_1, %c0_2] : memref<27x32xbf16, #tpu.memory_space<vmem>>, vector<27x32xbf16>
    %cst = arith.constant dense<0.000000e+00> : vector<256x32xf32>
    %2 = tpu.matmul %0, %1, %cst {dimension_numbers = #tpu.dot_dimension_numbers<[1], [0], [0], [1], [0, 0, 1, 1], [], []>} : vector<256x27xbf16>, vector<27x32xbf16>, vector<256x32xf32> -> vector<256x32xf32>
    %c0_3 = arith.constant 0 : index
    %c0_4 = arith.constant 0 : index
    %3 = vector.load %arg3[%c0_3, %c0_4] : memref<1x32xf32, #tpu.memory_space<vmem>>, vector<1x32xf32>
    %4 = vector.broadcast %3 : vector<1x32xf32> to vector<256x32xf32>
    %5 = arith.addf %2, %4 : vector<256x32xf32>
    %cst_5 = arith.constant 0.000000e+00 : f32
    %6 = vector.broadcast %cst_5 : f32 to vector<256x32xf32>
    %7 = arith.maximumf %5, %6 : vector<256x32xf32>
    %8 = arith.truncf %7 : vector<256x32xf32> to vector<256x32xbf16>
    %c0_6 = arith.constant 0 : index
    %c0_7 = arith.constant 0 : index
    %9 = vector.load %arg4[%c0_6, %c0_7] : memref<256x32xbf16, #tpu.memory_space<vmem>>, vector<256x32xbf16>
    tpu.vector_store %arg4[%c0_6, %c0_7], %8 {strides = array<i32>} : memref<256x32xbf16, #tpu.memory_space<vmem>>, vector<256x32xbf16>,
    return
  }
  func.func @transform_0(%arg0: i32) -> (i32, i32) {
    %c0_i32 = arith.constant 0 : i32
    %c0_i32_0 = arith.constant 0 : i32
    return %arg0, %c0_i32 : i32, i32
  }
  func.func @transform_1(%arg0: i32) -> (i32, i32) {
    %c0_i32 = arith.constant 0 : i32
    %c0_i32_0 = arith.constant 0 : i32
    %c0_i32_1 = arith.constant 0 : i32
    return %c0_i32, %c0_i32_0 : i32, i32
  }
  func.func @transform_2(%arg0: i32) -> (i32, i32) {
    %c0_i32 = arith.constant 0 : i32
    %c0_i32_0 = arith.constant 0 : i32
    %c0_i32_1 = arith.constant 0 : i32
    return %c0_i32, %c0_i32_0 : i32, i32
  }
  func.func @transform_3(%arg0: i32) -> (i32, i32) {
    %c0_i32 = arith.constant 0 : i32
    %c0_i32_0 = arith.constant 0 : i32
    return %arg0, %c0_i32 : i32, i32
  }
}

</mosaic_0001>

<llo_original>
// kernel: tpu_custom_call.1
$region0: #{tpu_custom_call.1}
  #allocation0 [shape = 'u32[]', space=smem, size = 0x4, offset = 0x4, fixed_abs, tag = 'smem constant byte address 0x4 - core index']
  #allocation1 [shape = 'u32[144,128]{1,0:T(1,128)}', space=vmem, size = 0x12000, scoped, tag = 'internal scratch']
  %s0 = inlined_call_operand.vmem [shape: bf16[450,27], index: 0, kind: input, shape index: {}]
  %s1 = inlined_call_operand.vmem [shape: bf16[27,32], index: 1, kind: input, shape index: {}]
  %s2 = inlined_call_operand.vmem [shape: f32[1,32], index: 2, kind: input, shape index: {}]
  %s3 = inlined_call_operand.vmem [shape: bf16[450,32], index: 3, kind: output, shape index: {}]
  %s4 = sld [smem:[#allocation0]]
  $region89: #{tpu_custom_call.1} parent=0
    _
  %s6 = ssub.s32 1, %s4
  %s7 = scalar_select 0, %s6, %s4
  $region1: #{tpu_custom_call.1} parent=0
    #allocation2 [shape = 'u8[131072]{0}', space=vmem, size = 0x20000, scoped, tag = 'output window, operand 0']
    loop: start=0, step=1, limit=4
    $region2: #{tpu_custom_call.1} parent=1 // loop_pre_header
      _
    $region3: #{tpu_custom_call.1} parent=1 // loop_header
      %s9 = sphi 0, %s13
      %p10 = scmp.ge.s32.totalorder %s9, 4
      %s19 = sphi 0, %s21
      %s22 = sphi 0, %s19
      %s23 = sphi 0, %s22
      %s39 = sphi 0, %s23
      %s43 = sphi 0, %s43
      %s45 = sphi 0, %s43
      %s46 = sphi 0, %s45
      %s60 = sphi 0, %s46
      %s64 = sphi 0, %s64
      %s66 = sphi 0, %s64
      %s67 = sphi 0, %s66
      %s81 = sphi 0, %s67
      %s87 = sphi 0, %s89
      %s90 = sphi 0, %s87
      %s91 = sphi 0, %s90
      %s107 = sphi 0, %s91
    $region4: #{tpu_custom_call.1} parent=1 // loop_header_branch
      %12 = sbr.rel (%p10) target = $region8
    $region5: #{tpu_custom_call.1} parent=1 // loop_body
      %s14 = ssub.s32 %s9, 1
      %s15 = ssub.s32 %s9, 2
      %s16 = sadd.s32 %s9, 1
      %s17 = ssub.s32 %s9, %s16
      %p18 = scmp.eq.s32.totalorder %s17, 0
      %s20 = sadd.s32 %s19, 1
      %s21 = scalar_select %p18, %s19, %s20
      %p24 = pneg %p18
      %p25 = scmp.eq.s32.totalorder %s9, 1
      %p26 = por %p24, %p25
      %p27 = scmp.ne.s32.totalorder %s19, %s22
      %p28 = scmp.eq.s32.totalorder %s9, 0
      %p29 = por %p27, %p28
      %p30 = scmp.ne.s32.totalorder %s19, %s22
      %p31 = scmp.eq.s32.totalorder %s14, 1
      %p32 = por %p30, %p31
      %p33 = scmp.ne.s32.totalorder %s22, %s23
      %p34 = scmp.eq.s32.totalorder %s14, 0
      %p35 = por %p33, %p34
      %p36 = scmp.ne.s32.totalorder %s22, %s23
      %p37 = scmp.eq.s32.totalorder %s15, 1
      %p38 = por %p36, %p37
      %p40 = scmp.ne.s32.totalorder %s23, %s39
      %p41 = scmp.eq.s32.totalorder %s15, 0
      %p42 = por %p40, %p41
      %s44 = sadd.s32 %s43, 1
      %p47 = scmp.eq.s32.totalorder %s9, 1
      %p48 = scmp.ne.s32.totalorder %s43, %s45
      %p49 = scmp.eq.s32.totalorder %s9, 0
      %p50 = por %p48, %p49
      %p51 = scmp.ne.s32.totalorder %s43, %s45
      %p52 = scmp.eq.s32.totalorder %s14, 1
      %p53 = por %p51, %p52
      %p54 = scmp.ne.s32.totalorder %s45, %s46
      %p55 = scmp.eq.s32.totalorder %s14, 0
      %p56 = por %p54, %p55
      %p57 = scmp.ne.s32.totalorder %s45, %s46
      %p58 = scmp.eq.s32.totalorder %s15, 1
      %p59 = por %p57, %p58
      %p61 = scmp.ne.s32.totalorder %s46, %s60
      %p62 = scmp.eq.s32.totalorder %s15, 0
      %p63 = por %p61, %p62
      %s65 = sadd.s32 %s64, 1
      %p68 = scmp.eq.s32.totalorder %s9, 1
      %p69 = scmp.ne.s32.totalorder %s64, %s66
      %p70 = scmp.eq.s32.totalorder %s9, 0
      %p71 = por %p69, %p70
      %p72 = scmp.ne.s32.totalorder %s64, %s66
      %p73 = scmp.eq.s32.totalorder %s14, 1
      %p74 = por %p72, %p73
      %p75 = scmp.ne.s32.totalorder %s66, %s67
      %p76 = scmp.eq.s32.totalorder %s14, 0
      %p77 = por %p75, %p76
      %p78 = scmp.ne.s32.totalorder %s66, %s67
      %p79 = scmp.eq.s32.totalorder %s15, 1
      %p80 = por %p78, %p79
      %p82 = scmp.ne.s32.totalorder %s67, %s81
      %p83 = scmp.eq.s32.totalorder %s15, 0
      %p84 = por %p82, %p83
      %s85 = ssub.s32 %s9, %s16
      %p86 = scmp.eq.s32.totalorder %s85, 0
      %s88 = sadd.s32 %s87, 1
      %s89 = scalar_select %p86, %s87, %s88
      %p92 = pneg %p86
      %p93 = scmp.eq.s32.totalorder %s9, 1
      %p94 = por %p92, %p93
      %p95 = scmp.ne.s32.totalorder %s87, %s90
      %p96 = scmp.eq.s32.totalorder %s9, 0
      %p97 = por %p95, %p96
      %p98 = scmp.ne.s32.totalorder %s87, %s90
      %p99 = scmp.eq.s32.totalorder %s14, 1
      %p100 = por %p98, %p99
      %p101 = scmp.ne.s32.totalorder %s90, %s91
      %p102 = scmp.eq.s32.totalorder %s14, 0
      %p103 = por %p101, %p102
      %p104 = scmp.ne.s32.totalorder %s90, %s91
      %p105 = scmp.eq.s32.totalorder %s15, 1
      %p106 = por %p104, %p105
      %p108 = scmp.ne.s32.totalorder %s91, %s107
      %p109 = scmp.eq.s32.totalorder %s15, 0
      %p110 = por %p108, %p109
      %p111 = scmp.le.s32.totalorder 1, %s9
      %p112 = scmp.lt.s32.totalorder %s9, 3
      %p113 = pnand %p111, %p112
      %p114 = pneg %p113
      // Predicated region
      $region9: #{tpu_custom_call.1} parent=5 // pred_check
        _
      $region10: #{tpu_custom_call.1} parent=5 // pred_check_branch
        %116 = sbr.rel (%p113) target = $region12
      $region11: #{tpu_custom_call.1} parent=5 // pred_region
        %s117 = ssub.s32 %s9, 1
        // Predicated region
        $region13: #{tpu_custom_call.1} parent=11 // pred_check
          %p118 = pneg %p56
        $region14: #{tpu_custom_call.1} parent=11 // pred_check_branch
          %120 = sbr.rel (%p118) target = $region16
        $region15: #{tpu_custom_call.1} parent=11 // pred_region
          _
        $region16: #{tpu_custom_call.1} parent=11 // pred_fallthru
          _
        // Predicated region
        $region17: #{tpu_custom_call.1} parent=11 // pred_check
          %p121 = pneg %p77
        $region18: #{tpu_custom_call.1} parent=11 // pred_check_branch
          %123 = sbr.rel (%p121) target = $region20
        $region19: #{tpu_custom_call.1} parent=11 // pred_region
          _
        $region20: #{tpu_custom_call.1} parent=11 // pred_fallthru
          _
      $region12: #{tpu_custom_call.1} parent=5 // pred_fallthru
        _
      %p124 = scmp.lt.s32.totalorder %s9, 2
      // Predicated region
      $region21: #{tpu_custom_call.1} parent=5 // pred_check
        %p125 = pneg %p124
      $region22: #{tpu_custom_call.1} parent=5 // pred_check_branch
        %127 = sbr.rel (%p125) target = $region24
      $region23: #{tpu_custom_call.1} parent=5 // pred_region
        // Predicated region
        $region25: #{tpu_custom_call.1} parent=23 // pred_check
          %p128 = pneg %p29
        $region26: #{tpu_custom_call.1} parent=23 // pred_check_branch
          %130 = sbr.rel (%p128) target = $region28
        $region27: #{tpu_custom_call.1} parent=23 // pred_region
          %s131 = smul.u32 32, %s9
          %s132 = ssub.s32 57, %s131
          %p133 = scmp.lt.s32.totalorder %s132, 32
          %s134 = scalar_select %p133, %s132, 32
          %s135 = smul.u32 64, %s134
          %p136 = scmp.lt.s32.totalorder %s131, 56
          %s137 = scalar_select %p136, %s131, 56
          %s138 = smul.addr %s137, 4
          %s139 = scalar_lea.vmem %s0, %s138
          %s140 = smul.u32 32, %s9
          %s141 = ssub.s32 57, %s140
          %p142 = scmp.lt.s32.totalorder %s141, 32
          %s143 = scalar_select %p142, %s141, 32
          %s144 = smul.u32 64, %s143
        $region28: #{tpu_custom_call.1} parent=23 // pred_fallthru
          _
      $region24: #{tpu_custom_call.1} parent=5 // pred_fallthru
        _
      %p145 = scmp.le.s32.totalorder 1, %s9
      %p146 = scmp.lt.s32.totalorder %s9, 3
      %p147 = pnand %p145, %p146
      %p148 = pneg %p147
      // Predicated region
      $region29: #{tpu_custom_call.1} parent=5 // pred_check
        _
      $region30: #{tpu_custom_call.1} parent=5 // pred_check_branch
        %150 = sbr.rel (%p147) target = $region32
      $region31: #{tpu_custom_call.1} parent=5 // pred_region
        %s151 = ssub.s32 %s9, 1
        %s152 = smul.u32 32, %s14
        %s153 = ssub.s32 57, %s152
        %p154 = scmp.lt.s32.totalorder %s153, 32
        %s155 = scalar_select %p154, %s153, 32
        %s156 = smul.u32 64, %s155
        %p157 = scmp.lt.s32.totalorder %s152, 56
        %s158 = scalar_select %p157, %s152, 56
        %s159 = smul.addr %s158, 4
        %s160 = scalar_lea.vmem %s0, %s159
        %p161 = pneg %p35
        %p162 = pneg %p32
        %p163 = pneg %p56
        %p164 = pneg %p53
        %p165 = pneg %p77
        %p166 = pneg %p74
        %p167 = pneg %p103
        %p168 = pneg %p100
        %s169 = sand.u32 %s90, 1
        %s170 = sand.u32 %s90, 1
        %s171 = smul.addr %s170, 128
        %s172 = scalar_lea.vmem [#allocation2], %s171
        %s173 = smul.u32 32, %s14
        %s174 = ssub.s32 57, %s173
        %p175 = scmp.lt.s32.totalorder %s174, 32
        %s176 = scalar_select %p175, %s174, 32
        %s177 = smul.u32 64, %s176
        %p178 = scmp.lt.s32.totalorder %s173, 56
        %s179 = scalar_select %p178, %s173, 56
        %s180 = smul.addr %s179, 4
        %s181 = scalar_lea.vmem %s0, %s180
        %s182 = smul.u32 32, %s14
        %s183 = ssub.s32 57, %s182
        %p184 = scmp.lt.s32.totalorder %s183, 32
        %s185 = scalar_select %p184, %s183, 32
        %s186 = smul.u32 64, %s185
        %s187 = smul.u32 32, %s14
        %s188 = ssub.s32 57, %s187
        %p189 = scmp.lt.s32.totalorder %s188, 32
        %s190 = scalar_select %p189, %s188, 32
        %s191 = smul.u32 64, %s190
        %v193 = vld [vmem:[%s181] sm:$0xf]
        %v194 = vld [vmem:[%s181 + $0x4] sm:$0xf]
        %v195 = vld [vmem:[%s181 + $0x8] sm:$0xf]
        %v196 = vld [vmem:[%s181 + $0xc] sm:$0xf]
        %v197 = vld [vmem:[%s181 + $0x10] sm:$0xf]
        %v198 = vld [vmem:[%s181 + $0x14] sm:$0xf]
        %v199 = vld [vmem:[%s181 + $0x18] sm:$0xf]
        %v200 = vld [vmem:[%s181 + $0x1c] sm:$0xf]
        %v201 = vld [vmem:[%s181 + $0x20] sm:$0xf]
        %v202 = vld [vmem:[%s181 + $0x24] sm:$0xf]
        %v203 = vld [vmem:[%s181 + $0x28] sm:$0xf]
        %v204 = vld [vmem:[%s181 + $0x2c] sm:$0xf]
        %v205 = vld [vmem:[%s181 + $0x30] sm:$0xf]
        %v206 = vld [vmem:[%s181 + $0x34] sm:$0xf]
        %v207 = vld [vmem:[%s181 + $0x38] sm:$0xf]
        %v208 = vld [vmem:[%s181 + $0x3c] sm:$0xf]
        %v209 = vld [vmem:[%s181 + $0x40] sm:$0xf]
        %v210 = vld [vmem:[%s181 + $0x44] sm:$0xf]
        %v211 = vld [vmem:[%s181 + $0x48] sm:$0xf]
        %v212 = vld [vmem:[%s181 + $0x4c] sm:$0xf]
        %v213 = vld [vmem:[%s181 + $0x50] sm:$0xf]
        %v214 = vld [vmem:[%s181 + $0x54] sm:$0xf]
        %v215 = vld [vmem:[%s181 + $0x58] sm:$0xf]
        %v216 = vld [vmem:[%s181 + $0x5c] sm:$0xf]
        %v217 = vld [vmem:[%s181 + $0x60] sm:$0xf]
        %v218 = vld [vmem:[%s181 + $0x64] sm:$0xf]
        %v219 = vld [vmem:[%s181 + $0x68] sm:$0xf]
        %v220 = vld [vmem:[%s181 + $0x6c] sm:$0xf]
        %v221 = vld [vmem:[%s181 + $0x70] sm:$0xf]
        %v222 = vld [vmem:[%s181 + $0x74] sm:$0xf]
        %v223 = vld [vmem:[%s181 + $0x78] sm:$0xf]
        %v224 = vld [vmem:[%s181 + $0x7c] sm:$0xf]
        %v225 = vld [vmem:[%s1] sm:$0xf]
        %v226 = vld [vmem:[%s1 + $0x4] sm:$0xf]
        %v227 = vld [vmem:[%s1 + $0x8] sm:$0xf]
        %v228 = vld [vmem:[%s1 + $0xc] sm:$0x3]
        %v229 = vld [vmem:[%s2] sm:$0x1]
        %v231 = vlaneseq
        %v232 = vshrl.u32 %v231, 7
        %v233 = vsub.s32 0, %v232
        %v234 = vrot.slane %v229, %v233
        %v268 = vunpack.c.l.b16 %v193
        %v269 = vunpack.c.l.b16 %v194
        %v270 = vunpack.c.l.b16 %v195
        %v271 = vunpack.c.l.b16 %v196
        %v272 = vunpack.c.l.b16 %v197
        %v273 = vunpack.c.l.b16 %v198
        %v274 = vunpack.c.l.b16 %v199
        %v275 = vunpack.c.l.b16 %v200
        %v276 = vunpack.c.l.b16 %v201
        %v277 = vunpack.c.l.b16 %v202
        %v278 = vunpack.c.l.b16 %v203
        %v279 = vunpack.c.l.b16 %v204
        %v280 = vunpack.c.l.b16 %v205
        %v281 = vunpack.c.l.b16 %v206
        %v282 = vunpack.c.l.b16 %v207
        %v283 = vunpack.c.l.b16 %v208
        %v284 = vunpack.c.l.b16 %v209
        %v285 = vunpack.c.l.b16 %v210
        %v286 = vunpack.c.l.b16 %v211
        %v287 = vunpack.c.l.b16 %v212
        %v288 = vunpack.c.l.b16 %v213
        %v289 = vunpack.c.l.b16 %v214
        %v290 = vunpack.c.l.b16 %v215
        %v291 = vunpack.c.l.b16 %v216
        %v292 = vunpack.c.l.b16 %v217
        %v293 = vunpack.c.l.b16 %v218
        %v294 = vunpack.c.l.b16 %v219
        %v295 = vunpack.c.l.b16 %v220
        %v296 = vunpack.c.l.b16 %v221
        %v297 = vunpack.c.l.b16 %v222
        %v298 = vunpack.c.l.b16 %v223
        %v299 = vunpack.c.l.b16 %v224
        %v300 = vpack.c.b16 %v269, %v268
        %v301 = vpack.c.b16 %v271, %v270
        %v302 = vpack.c.b16 %v273, %v272
        %v303 = vpack.c.b16 %v275, %v274
        %v304 = vpack.c.b16 %v277, %v276
        %v305 = vpack.c.b16 %v279, %v278
        %v306 = vpack.c.b16 %v281, %v280
        %v307 = vpack.c.b16 %v283, %v282
        %v308 = vpack.c.b16 %v285, %v284
        %v309 = vpack.c.b16 %v287, %v286
        %v310 = vpack.c.b16 %v289, %v288
        %v311 = vpack.c.b16 %v291, %v290
        %v312 = vpack.c.b16 %v293, %v292
        %v313 = vpack.c.b16 %v295, %v294
        %v314 = vpack.c.b16 %v297, %v296
        %v315 = vpack.c.b16 %v299, %v298
        %v320 = vunpack.c.l.b16 %v225
        %v321 = vunpack.c.l.b16 %v226
        %v322 = vunpack.c.l.b16 %v227
        %v323 = vunpack.c.l.b16 %v228
        %v324 = vpack.c.b16 %v321, %v320
        %v325 = vpack.c.b16 %v323, %v322
        %vm327 = vcmask 220160
        %v329 = vsel %vm327, %v300, 0
        %v332 = vsel %vm327, %v301, 0
        %v335 = vsel %vm327, %v302, 0
        %v338 = vsel %vm327, %v303, 0
        %v341 = vsel %vm327, %v304, 0
        %v344 = vsel %vm327, %v305, 0
        %v347 = vsel %vm327, %v306, 0
        %v350 = vsel %vm327, %v307, 0
        %v353 = vsel %vm327, %v308, 0
        %v356 = vsel %vm327, %v309, 0
        %v359 = vsel %vm327, %v310, 0
        %v362 = vsel %vm327, %v311, 0
        %v365 = vsel %vm327, %v312, 0
        %v368 = vsel %vm327, %v313, 0
        %v371 = vsel %vm327, %v314, 0
        %v374 = vsel %vm327, %v315, 0
        %vm376 = vcmask 1044480
        %vm377 = vcmask 1045504
        %v378 = vsel %vm376, 4294967295, 65535
        %v379 = vsel %vm377, %v378, 0
        %v381 = vand.u32 %v325, %v379
        %383 = vmatprep.subr.bf16.mxu0 0
        %384 = vmatpush1.bf16.msra.mxu0 %v324
        %385 = vmatprep.subr.bf16.mxu0 0
        %386 = vmatpush1.bf16.msra.mxu0 %v381
        %387 = vmatprep.subr.bf16.mxu0 0
        %388 = vmatpush1.bf16.msra.mxu0 0
        %389 = vmatprep.subr.bf16.mxu0 0
        %390 = vmatpush1.bf16.msra.mxu0 0
        %391 = vmatprep.subr.bf16.mxu0 0
        %392 = vmatpush1.bf16.msra.mxu0 0
        %393 = vmatprep.subr.bf16.mxu0 0
        %394 = vmatpush1.bf16.msra.mxu0 0
        %395 = vmatprep.subr.bf16.mxu0 0
        %396 = vmatpush1.bf16.msra.mxu0 0
        %397 = vmatprep.subr.bf16.mxu0 0
        %398 = vmatpush1.bf16.msra.mxu0 0
        %399 = vmatprep.subr.bf16.mxu0 0
        %400 = vmatpush1.bf16.msra.mxu0 0
        %401 = vmatprep.subr.bf16.mxu0 0
        %402 = vmatpush1.bf16.msra.mxu0 0
        %403 = vmatprep.subr.bf16.mxu0 0
        %404 = vmatpush1.bf16.msra.mxu0 0
        %405 = vmatprep.subr.bf16.mxu0 0
        %406 = vmatpush1.bf16.msra.mxu0 0
        %407 = vmatprep.subr.bf16.mxu0 0
        %408 = vmatpush1.bf16.msra.mxu0 0
        %409 = vmatprep.subr.bf16.mxu0 0
        %410 = vmatpush1.bf16.msra.mxu0 0
        %411 = vmatprep.subr.bf16.mxu0 0
        %412 = vmatpush1.bf16.msra.mxu0 0
        %413 = vmatprep.subr.bf16.mxu0 0
        %414 = vmatpush1.bf16.msra.mxu0 0
        %415 = vmatprep.mubr.bf16.mxu0 0
        %416 = vmatmul.mubr.bf16.gmra.mrb[0].mxu0 %v329
        %v417 = vpop.f32.mrb[0].mxu0
        %v418 = vadd.f32 %v234, %v417
        %v419 = vpop.f32.mrb[0].mxu0
        %v420 = vpop.f32.mrb[0].mxu0
        %v421 = vadd.f32 %v234, %v420
        %v422 = vpop.f32.mrb[0].mxu0
        %423 = vmatprep.mubr.bf16.mxu0 0
        %424 = vmatmul.mubr.bf16.gmra.mrb[0].mxu0 %v332
        %v425 = vpop.f32.mrb[0].mxu0
        %v426 = vadd.f32 %v234, %v425
        %v427 = vpop.f32.mrb[0].mxu0
        %v428 = vpop.f32.mrb[0].mxu0
        %v429 = vadd.f32 %v234, %v428
        %v430 = vpop.f32.mrb[0].mxu0
        %431 = vmatprep.mubr.bf16.mxu0 0
        %432 = vmatmul.mubr.bf16.gmra.mrb[0].mxu0 %v335
        %v433 = vpop.f32.mrb[0].mxu0
        %v434 = vadd.f32 %v234, %v433
        %v435 = vpop.f32.mrb[0].mxu0
        %v436 = vpop.f32.mrb[0].mxu0
        %v437 = vadd.f32 %v234, %v436
        %v438 = vpop.f32.mrb[0].mxu0
        %439 = vmatprep.mubr.bf16.mxu0 0
        %440 = vmatmul.mubr.bf16.gmra.mrb[0].mxu0 %v338
        %v441 = vpop.f32.mrb[0].mxu0
        %v442 = vadd.f32 %v234, %v441
        %v443 = vpop.f32.mrb[0].mxu0
        %v444 = vpop.f32.mrb[0].mxu0
        %v445 = vadd.f32 %v234, %v444
        %v446 = vpop.f32.mrb[0].mxu0
        %447 = vmatprep.mubr.bf16.mxu0 0
        %448 = vmatmul.mubr.bf16.gmra.mrb[0].mxu0 %v341
        %v449 = vpop.f32.mrb[0].mxu0
        %v450 = vadd.f32 %v234, %v449
        %v451 = vpop.f32.mrb[0].mxu0
        %v452 = vpop.f32.mrb[0].mxu0
        %v453 = vadd.f32 %v234, %v452
        %v454 = vpop.f32.mrb[0].mxu0
        %455 = vmatprep.mubr.bf16.mxu0 0
        %456 = vmatmul.mubr.bf16.gmra.mrb[0].mxu0 %v344
        %v457 = vpop.f32.mrb[0].mxu0
        %v458 = vadd.f32 %v234, %v457
        %v459 = vpop.f32.mrb[0].mxu0
        %v460 = vpop.f32.mrb[0].mxu0
        %v461 = vadd.f32 %v234, %v460
        %v462 = vpop.f32.mrb[0].mxu0
        %463 = vmatprep.mubr.bf16.mxu0 0
        %464 = vmatmul.mubr.bf16.gmra.mrb[0].mxu0 %v347
        %v465 = vpop.f32.mrb[0].mxu0
        %v466 = vadd.f32 %v234, %v465
        %v467 = vpop.f32.mrb[0].mxu0
        %v468 = vpop.f32.mrb[0].mxu0
        %v469 = vadd.f32 %v234, %v468
        %v470 = vpop.f32.mrb[0].mxu0
        %471 = vmatprep.mubr.bf16.mxu0 0
        %472 = vmatmul.mubr.bf16.gmra.mrb[0].mxu0 %v350
        %v473 = vpop.f32.mrb[0].mxu0
        %v474 = vadd.f32 %v234, %v473
        %v475 = vpop.f32.mrb[0].mxu0
        %v476 = vpop.f32.mrb[0].mxu0
        %v477 = vadd.f32 %v234, %v476
        %v478 = vpop.f32.mrb[0].mxu0
        %479 = vmatprep.mubr.bf16.mxu0 0
        %480 = vmatmul.mubr.bf16.gmra.mrb[0].mxu0 %v353
        %v481 = vpop.f32.mrb[0].mxu0
        %v482 = vadd.f32 %v234, %v481
        %v483 = vpop.f32.mrb[0].mxu0
        %v484 = vpop.f32.mrb[0].mxu0
        %v485 = vadd.f32 %v234, %v484
        %v486 = vpop.f32.mrb[0].mxu0
        %487 = vmatprep.mubr.bf16.mxu0 0
        %488 = vmatmul.mubr.bf16.gmra.mrb[0].mxu0 %v356
        %v489 = vpop.f32.mrb[0].mxu0
        %v490 = vadd.f32 %v234, %v489
        %v491 = vpop.f32.mrb[0].mxu0
        %v492 = vpop.f32.mrb[0].mxu0
        %v493 = vadd.f32 %v234, %v492
        %v494 = vpop.f32.mrb[0].mxu0
        %495 = vmatprep.mubr.bf16.mxu0 0
        %496 = vmatmul.mubr.bf16.gmra.mrb[0].mxu0 %v359
        %v497 = vpop.f32.mrb[0].mxu0
        %v498 = vadd.f32 %v234, %v497
        %v499 = vpop.f32.mrb[0].mxu0
        %v500 = vpop.f32.mrb[0].mxu0
        %v501 = vadd.f32 %v234, %v500
        %v502 = vpop.f32.mrb[0].mxu0
        %503 = vmatprep.mubr.bf16.mxu0 0
        %504 = vmatmul.mubr.bf16.gmra.mrb[0].mxu0 %v362
        %v505 = vpop.f32.mrb[0].mxu0
        %v506 = vadd.f32 %v234, %v505
        %v507 = vpop.f32.mrb[0].mxu0
        %v508 = vpop.f32.mrb[0].mxu0
        %v509 = vadd.f32 %v234, %v508
        %v510 = vpop.f32.mrb[0].mxu0
        %511 = vmatprep.mubr.bf16.mxu0 0
        %512 = vmatmul.mubr.bf16.gmra.mrb[0].mxu0 %v365
        %v513 = vpop.f32.mrb[0].mxu0
        %v514 = vadd.f32 %v234, %v513
        %v515 = vpop.f32.mrb[0].mxu0
        %v516 = vpop.f32.mrb[0].mxu0
        %v517 = vadd.f32 %v234, %v516
        %v518 = vpop.f32.mrb[0].mxu0
        %519 = vmatprep.mubr.bf16.mxu0 0
        %520 = vmatmul.mubr.bf16.gmra.mrb[0].mxu0 %v368
        %v521 = vpop.f32.mrb[0].mxu0
        %v522 = vadd.f32 %v234, %v521
        %v523 = vpop.f32.mrb[0].mxu0
        %v524 = vpop.f32.mrb[0].mxu0
        %v525 = vadd.f32 %v234, %v524
        %v526 = vpop.f32.mrb[0].mxu0
        %527 = vmatprep.mubr.bf16.mxu0 0
        %528 = vmatmul.mubr.bf16.gmra.mrb[0].mxu0 %v371
        %v529 = vpop.f32.mrb[0].mxu0
        %v530 = vadd.f32 %v234, %v529
        %v531 = vpop.f32.mrb[0].mxu0
        %v532 = vpop.f32.mrb[0].mxu0
        %v533 = vadd.f32 %v234, %v532
        %v534 = vpop.f32.mrb[0].mxu0
        %535 = vmatprep.mubr.bf16.mxu0 0
        %536 = vmatmul.mubr.bf16.gmra.mrb[0].mxu0 %v374
        %v537 = vpop.f32.mrb[0].mxu0
        %v538 = vadd.f32 %v234, %v537
        %v539 = vpop.f32.mrb[0].mxu0
        %v540 = vpop.f32.mrb[0].mxu0
        %v541 = vadd.f32 %v234, %v540
        %v542 = vpop.f32.mrb[0].mxu0
        %543 = vdwg.mxu0
        %v544 = vmax.f32 %v418, 0.0
        %v545 = vmax.f32 %v421, 0.0
        %v546 = vmax.f32 %v426, 0.0
        %v547 = vmax.f32 %v429, 0.0
        %v548 = vmax.f32 %v434, 0.0
        %v549 = vmax.f32 %v437, 0.0
        %v550 = vmax.f32 %v442, 0.0
        %v551 = vmax.f32 %v445, 0.0
        %v552 = vmax.f32 %v450, 0.0
        %v553 = vmax.f32 %v453, 0.0
        %v554 = vmax.f32 %v458, 0.0
        %v555 = vmax.f32 %v461, 0.0
        %v556 = vmax.f32 %v466, 0.0
        %v557 = vmax.f32 %v469, 0.0
        %v558 = vmax.f32 %v474, 0.0
        %v559 = vmax.f32 %v477, 0.0
        %v560 = vmax.f32 %v482, 0.0
        %v561 = vmax.f32 %v485, 0.0
        %v562 = vmax.f32 %v490, 0.0
        %v563 = vmax.f32 %v493, 0.0
        %v564 = vmax.f32 %v498, 0.0
        %v565 = vmax.f32 %v501, 0.0
        %v566 = vmax.f32 %v506, 0.0
        %v567 = vmax.f32 %v509, 0.0
        %v568 = vmax.f32 %v514, 0.0
        %v569 = vmax.f32 %v517, 0.0
        %v570 = vmax.f32 %v522, 0.0
        %v571 = vmax.f32 %v525, 0.0
        %v572 = vmax.f32 %v530, 0.0
        %v573 = vmax.f32 %v533, 0.0
        %v574 = vmax.f32 %v538, 0.0
        %v575 = vmax.f32 %v541, 0.0
        %v576 = vpack.c.bf16 %v545, %v544
        %v577 = vpack.c.bf16 %v547, %v546
        %v578 = vpack.c.bf16 %v549, %v548
        %v579 = vpack.c.bf16 %v551, %v550
        %v580 = vpack.c.bf16 %v553, %v552
        %v581 = vpack.c.bf16 %v555, %v554
        %v582 = vpack.c.bf16 %v557, %v556
        %v583 = vpack.c.bf16 %v559, %v558
        %v584 = vpack.c.bf16 %v561, %v560
        %v585 = vpack.c.bf16 %v563, %v562
        %v586 = vpack.c.bf16 %v565, %v564
        %v587 = vpack.c.bf16 %v567, %v566
        %v588 = vpack.c.bf16 %v569, %v568
        %v589 = vpack.c.bf16 %v571, %v570
        %v590 = vpack.c.bf16 %v573, %v572
        %v591 = vpack.c.bf16 %v575, %v574
        %v608 = vunpack.c.l.b16 %v576
        %v609 = vunpack.c.h.b16 %v576
        %v610 = vunpack.c.l.b16 %v577
        %v611 = vunpack.c.h.b16 %v577
        %v612 = vunpack.c.l.b16 %v578
        %v613 = vunpack.c.h.b16 %v578
        %v614 = vunpack.c.l.b16 %v579
        %v615 = vunpack.c.h.b16 %v579
        %v616 = vunpack.c.l.b16 %v580
        %v617 = vunpack.c.h.b16 %v580
        %v618 = vunpack.c.l.b16 %v581
        %v619 = vunpack.c.h.b16 %v581
        %v620 = vunpack.c.l.b16 %v582
        %v621 = vunpack.c.h.b16 %v582
        %v622 = vunpack.c.l.b16 %v583
        %v623 = vunpack.c.h.b16 %v583
        %v624 = vunpack.c.l.b16 %v584
        %v625 = vunpack.c.h.b16 %v584
        %v626 = vunpack.c.l.b16 %v585
        %v627 = vunpack.c.h.b16 %v585
        %v628 = vunpack.c.l.b16 %v586
        %v629 = vunpack.c.h.b16 %v586
        %v630 = vunpack.c.l.b16 %v587
        %v631 = vunpack.c.h.b16 %v587
        %v632 = vunpack.c.l.b16 %v588
        %v633 = vunpack.c.h.b16 %v588
        %v634 = vunpack.c.l.b16 %v589
        %v635 = vunpack.c.h.b16 %v589
        %v636 = vunpack.c.l.b16 %v590
        %v637 = vunpack.c.h.b16 %v590
        %v638 = vunpack.c.l.b16 %v591
        %v639 = vunpack.c.h.b16 %v591
        %v640 = vpack.c.b16 %v608, %v608
        %v641 = vpack.c.b16 %v609, %v609
        %v642 = vpack.c.b16 %v610, %v610
        %v643 = vpack.c.b16 %v611, %v611
        %v644 = vpack.c.b16 %v612, %v612
        %v645 = vpack.c.b16 %v613, %v613
        %v646 = vpack.c.b16 %v614, %v614
        %v647 = vpack.c.b16 %v615, %v615
        %v648 = vpack.c.b16 %v616, %v616
        %v649 = vpack.c.b16 %v617, %v617
        %v650 = vpack.c.b16 %v618, %v618
        %v651 = vpack.c.b16 %v619, %v619
        %v652 = vpack.c.b16 %v620, %v620
        %v653 = vpack.c.b16 %v621, %v621
        %v654 = vpack.c.b16 %v622, %v622
        %v655 = vpack.c.b16 %v623, %v623
        %v656 = vpack.c.b16 %v624, %v624
        %v657 = vpack.c.b16 %v625, %v625
        %v658 = vpack.c.b16 %v626, %v626
        %v659 = vpack.c.b16 %v627, %v627
        %v660 = vpack.c.b16 %v628, %v628
        %v661 = vpack.c.b16 %v629, %v629
        %v662 = vpack.c.b16 %v630, %v630
        %v663 = vpack.c.b16 %v631, %v631
        %v664 = vpack.c.b16 %v632, %v632
        %v665 = vpack.c.b16 %v633, %v633
        %v666 = vpack.c.b16 %v634, %v634
        %v667 = vpack.c.b16 %v635, %v635
        %v668 = vpack.c.b16 %v636, %v636
        %v669 = vpack.c.b16 %v637, %v637
        %v670 = vpack.c.b16 %v638, %v638
        %v671 = vpack.c.b16 %v639, %v639
        %vm704 = vcmask 257024
        %705 = vst.msk [vmem:[%s172] sm:$0xf] %vm704, %v640
        %706 = vst.msk [vmem:[%s172 + $0x4] sm:$0xf] %vm704, %v641
        %707 = vst.msk [vmem:[%s172 + $0x8] sm:$0xf] %vm704, %v642
        %708 = vst.msk [vmem:[%s172 + $0xc] sm:$0xf] %vm704, %v643
        %709 = vst.msk [vmem:[%s172 + $0x10] sm:$0xf] %vm704, %v644
        %710 = vst.msk [vmem:[%s172 + $0x14] sm:$0xf] %vm704, %v645
        %711 = vst.msk [vmem:[%s172 + $0x18] sm:$0xf] %vm704, %v646
        %712 = vst.msk [vmem:[%s172 + $0x1c] sm:$0xf] %vm704, %v647
        %713 = vst.msk [vmem:[%s172 + $0x20] sm:$0xf] %vm704, %v648
        %714 = vst.msk [vmem:[%s172 + $0x24] sm:$0xf] %vm704, %v649
        %715 = vst.msk [vmem:[%s172 + $0x28] sm:$0xf] %vm704, %v650
        %716 = vst.msk [vmem:[%s172 + $0x2c] sm:$0xf] %vm704, %v651
        %717 = vst.msk [vmem:[%s172 + $0x30] sm:$0xf] %vm704, %v652
        %718 = vst.msk [vmem:[%s172 + $0x34] sm:$0xf] %vm704, %v653
        %719 = vst.msk [vmem:[%s172 + $0x38] sm:$0xf] %vm704, %v654
        %720 = vst.msk [vmem:[%s172 + $0x3c] sm:$0xf] %vm704, %v655
        %721 = vst.msk [vmem:[%s172 + $0x40] sm:$0xf] %vm704, %v656
        %722 = vst.msk [vmem:[%s172 + $0x44] sm:$0xf] %vm704, %v657
        %723 = vst.msk [vmem:[%s172 + $0x48] sm:$0xf] %vm704, %v658
        %724 = vst.msk [vmem:[%s172 + $0x4c] sm:$0xf] %vm704, %v659
        %725 = vst.msk [vmem:[%s172 + $0x50] sm:$0xf] %vm704, %v660
        %726 = vst.msk [vmem:[%s172 + $0x54] sm:$0xf] %vm704, %v661
        %727 = vst.msk [vmem:[%s172 + $0x58] sm:$0xf] %vm704, %v662
        %728 = vst.msk [vmem:[%s172 + $0x5c] sm:$0xf] %vm704, %v663
        %729 = vst.msk [vmem:[%s172 + $0x60] sm:$0xf] %vm704, %v664
        %730 = vst.msk [vmem:[%s172 + $0x64] sm:$0xf] %vm704, %v665
        %731 = vst.msk [vmem:[%s172 + $0x68] sm:$0xf] %vm704, %v666
        %732 = vst.msk [vmem:[%s172 + $0x6c] sm:$0xf] %vm704, %v667
        %733 = vst.msk [vmem:[%s172 + $0x70] sm:$0xf] %vm704, %v668
        %734 = vst.msk [vmem:[%s172 + $0x74] sm:$0xf] %vm704, %v669
        %735 = vst.msk [vmem:[%s172 + $0x78] sm:$0xf] %vm704, %v670
        %736 = vst.msk [vmem:[%s172 + $0x7c] sm:$0xf] %vm704, %v671
        %s737 = sand.u32 %s90, 1
        %s738 = sand.u32 %s90, 1
        %s739 = smul.addr %s738, 128
        %s740 = scalar_lea.vmem [#allocation2], %s739
        // Predicated region
        $region33: #{tpu_custom_call.1} parent=31 // pred_check
          %p741 = pneg %p100
        $region34: #{tpu_custom_call.1} parent=31 // pred_check_branch
          %743 = sbr.rel (%p741) target = $region36
        $region35: #{tpu_custom_call.1} parent=31 // pred_region
          %s744 = smul.u32 32, %s14
          %s745 = ssub.s32 57, %s744
          %p746 = scmp.lt.s32.totalorder %s745, 32
          %s747 = scalar_select %p746, %s745, 32
          %s748 = smul.u32 64, %s747
          %p749 = scmp.ne.s32.totalorder 0, %s748
          %s750 = smul.addr %s744, 4
          %s751 = scalar_lea.vmem %s3, %s750
          // Predicated region
          $region37: #{tpu_custom_call.1} parent=35 // pred_check
            %p752 = pneg %p749
          $region38: #{tpu_custom_call.1} parent=35 // pred_check_branch
            %754 = sbr.rel (%p752) target = $region40
          $region39: #{tpu_custom_call.1} parent=35 // pred_region
            // Predicated region
            $region41: #{tpu_custom_call.1} parent=39 // pred_check
              _
            $region42: #{tpu_custom_call.1} parent=39 // pred_check_branch
              %756 = sbr.rel target = $region44
            $region43: #{tpu_custom_call.1} parent=39 // pred_region
              // Predicated region
              $region63: #{tpu_custom_call.1} parent=43 // pred_check
                _
              $region64: #{tpu_custom_call.1} parent=43 // pred_check_branch
                %867 = sbr.rel (0) target = $region66
              $region65: #{tpu_custom_call.1} parent=43 // pred_region
                %s869 = sshrl.u32 %s747, 5
                // While loop
                $region67: #{tpu_custom_call.1} parent=65 // loop_pre_header
                  _
                $region68: #{tpu_custom_call.1} parent=65 // loop_header
                  %s871 = sphi 0, %s873
                  %p872 = scmp.ge.s32.totalorder %s871, %s869
                  %s876 = sphi 0, %s945
                  %s877 = sphi %s740, %s948
                  %s878 = sphi %s751, %s949
                $region69: #{tpu_custom_call.1} parent=65 // loop_header_branch
                  %875 = sbr.rel (%p872) target = $region73
                $region70: #{tpu_custom_call.1} parent=65 // loop_body
                  %v879 = vld [vmem:[%s877] sm:$0xf]
                  %880 = vst [vmem:[%s878] sm:$0xf] %v879
                  %v881 = vld [vmem:[%s877 + $0x4] sm:$0xf]
                  %882 = vst [vmem:[%s878 + $0x4] sm:$0xf] %v881
                  %v883 = vld [vmem:[%s877 + $0x8] sm:$0xf]
                  %884 = vst [vmem:[%s878 + $0x8] sm:$0xf] %v883
                  %v885 = vld [vmem:[%s877 + $0xc] sm:$0xf]
                  %886 = vst [vmem:[%s878 + $0xc] sm:$0xf] %v885
                  %v887 = vld [vmem:[%s877 + $0x10] sm:$0xf]
                  %888 = vst [vmem:[%s878 + $0x10] sm:$0xf] %v887
                  %v889 = vld [vmem:[%s877 + $0x14] sm:$0xf]
                  %890 = vst [vmem:[%s878 + $0x14] sm:$0xf] %v889
                  %v891 = vld [vmem:[%s877 + $0x18] sm:$0xf]
                  %892 = vst [vmem:[%s878 + $0x18] sm:$0xf] %v891
                  %v893 = vld [vmem:[%s877 + $0x1c] sm:$0xf]
                  %894 = vst [vmem:[%s878 + $0x1c] sm:$0xf] %v893
                  %v895 = vld [vmem:[%s877 + $0x20] sm:$0xf]
                  %896 = vst [vmem:[%s878 + $0x20] sm:$0xf] %v895
                  %v897 = vld [vmem:[%s877 + $0x24] sm:$0xf]
                  %898 = vst [vmem:[%s878 + $0x24] sm:$0xf] %v897
                  %v899 = vld [vmem:[%s877 + $0x28] sm:$0xf]
                  %900 = vst [vmem:[%s878 + $0x28] sm:$0xf] %v899
                  %v901 = vld [vmem:[%s877 + $0x2c] sm:$0xf]
                  %902 = vst [vmem:[%s878 + $0x2c] sm:$0xf] %v901
                  %v903 = vld [vmem:[%s877 + $0x30] sm:$0xf]
                  %904 = vst [vmem:[%s878 + $0x30] sm:$0xf] %v903
                  %v905 = vld [vmem:[%s877 + $0x34] sm:$0xf]
                  %906 = vst [vmem:[%s878 + $0x34] sm:$0xf] %v905
                  %v907 = vld [vmem:[%s877 + $0x38] sm:$0xf]
                  %908 = vst [vmem:[%s878 + $0x38] sm:$0xf] %v907
                  %v909 = vld [vmem:[%s877 + $0x3c] sm:$0xf]
                  %910 = vst [vmem:[%s878 + $0x3c] sm:$0xf] %v909
                  %v911 = vld [vmem:[%s877 + $0x40] sm:$0xf]
                  %912 = vst [vmem:[%s878 + $0x40] sm:$0xf] %v911
                  %v913 = vld [vmem:[%s877 + $0x44] sm:$0xf]
                  %914 = vst [vmem:[%s878 + $0x44] sm:$0xf] %v913
                  %v915 = vld [vmem:[%s877 + $0x48] sm:$0xf]
                  %916 = vst [vmem:[%s878 + $0x48] sm:$0xf] %v915
                  %v917 = vld [vmem:[%s877 + $0x4c] sm:$0xf]
                  %918 = vst [vmem:[%s878 + $0x4c] sm:$0xf] %v917
                  %v919 = vld [vmem:[%s877 + $0x50] sm:$0xf]
                  %920 = vst [vmem:[%s878 + $0x50] sm:$0xf] %v919
                  %v921 = vld [vmem:[%s877 + $0x54] sm:$0xf]
                  %922 = vst [vmem:[%s878 + $0x54] sm:$0xf] %v921
                  %v923 = vld [vmem:[%s877 + $0x58] sm:$0xf]
                  %924 = vst [vmem:[%s878 + $0x58] sm:$0xf] %v923
                  %v925 = vld [vmem:[%s877 + $0x5c] sm:$0xf]
                  %926 = vst [vmem:[%s878 + $0x5c] sm:$0xf] %v925
                  %v927 = vld [vmem:[%s877 + $0x60] sm:$0xf]
                  %928 = vst [vmem:[%s878 + $0x60] sm:$0xf] %v927
                  %v929 = vld [vmem:[%s877 + $0x64] sm:$0xf]
                  %930 = vst [vmem:[%s878 + $0x64] sm:$0xf] %v929
                  %v931 = vld [vmem:[%s877 + $0x68] sm:$0xf]
                  %932 = vst [vmem:[%s878 + $0x68] sm:$0xf] %v931
                  %v933 = vld [vmem:[%s877 + $0x6c] sm:$0xf]
                  %934 = vst [vmem:[%s878 + $0x6c] sm:$0xf] %v933
                  %v935 = vld [vmem:[%s877 + $0x70] sm:$0xf]
                  %936 = vst [vmem:[%s878 + $0x70] sm:$0xf] %v935
                  %v937 = vld [vmem:[%s877 + $0x74] sm:$0xf]
                  %938 = vst [vmem:[%s878 + $0x74] sm:$0xf] %v937
                  %v939 = vld [vmem:[%s877 + $0x78] sm:$0xf]
                  %940 = vst [vmem:[%s878 + $0x78] sm:$0xf] %v939
                  %v941 = vld [vmem:[%s877 + $0x7c] sm:$0xf]
                  %942 = vst [vmem:[%s878 + $0x7c] sm:$0xf] %v941
                  %s943 = sadd.s32 1, %s876
                  %p944 = scmp.ge.s32.totalorder %s943, %s869
                  %s945 = scalar_select %p944, 0, %s943
                  %s946 = smul.u32 %s945, 128
                  %s947 = smul.u32 %s945, 128
                  %s948 = scalar_lea.vmem %s740, %s946 [#allocation2]
                  %s949 = scalar_lea.vmem %s751, %s947
                $region71: #{tpu_custom_call.1} parent=65 // loop_footer
                  %s873 = sadd.s32 %s871, 1
                $region72: #{tpu_custom_call.1} parent=65 // loop_footer_branch
                  %870 = sbr.rel target = $region68
                $region73: #{tpu_custom_call.1} parent=65 // loop_exit
                  _
                %s950 = sshrl.u32 %s747, 5
                %s951 = sand.u32 %s747, 31
                %s952 = smul.u32 %s950, 32
                %s953 = smul.u32 4, %s952
                %s954 = scalar_lea.vmem %s740, %s953 [#allocation2]
                %s955 = smul.u32 4, %s952
                %s956 = scalar_lea.vmem %s751, %s955
                // While loop
                $region74: #{tpu_custom_call.1} parent=65 // loop_pre_header
                  _
                $region75: #{tpu_custom_call.1} parent=65 // loop_header
                  %s958 = sphi 0, %s960
                  %p959 = scmp.ge.s32.totalorder %s958, %s951
                  %s963 = sphi 0, %s970
                  %s964 = sphi %s954, %s973
                  %s965 = sphi %s956, %s974
                $region76: #{tpu_custom_call.1} parent=65 // loop_header_branch
                  %962 = sbr.rel (%p959) target = $region80
                $region77: #{tpu_custom_call.1} parent=65 // loop_body
                  %v966 = vld [vmem:[%s964] sm:$0xf]
                  %967 = vst [vmem:[%s965] sm:$0xf] %v966
                  %s968 = sadd.s32 1, %s963
                  %p969 = scmp.ge.s32.totalorder %s968, %s951
                  %s970 = scalar_select %p969, 0, %s968
                  %s971 = smul.u32 %s970, 4
                  %s972 = smul.u32 %s970, 4
                  %s973 = scalar_lea.vmem %s954, %s971 [#allocation2]
                  %s974 = scalar_lea.vmem %s956, %s972
                $region78: #{tpu_custom_call.1} parent=65 // loop_footer
                  %s960 = sadd.s32 %s958, 1
                $region79: #{tpu_custom_call.1} parent=65 // loop_footer_branch
                  %957 = sbr.rel target = $region75
                $region80: #{tpu_custom_call.1} parent=65 // loop_exit
                  _
              $region66: #{tpu_custom_call.1} parent=43 // pred_fallthru
                _
            $region44: #{tpu_custom_call.1} parent=39 // pred_fallthru
              _
            // Predicated region
            $region45: #{tpu_custom_call.1} parent=39 // pred_check
              _
            $region46: #{tpu_custom_call.1} parent=39 // pred_check_branch
              %758 = sbr.rel (0) target = $region48
            $region47: #{tpu_custom_call.1} parent=39 // pred_region
              %s760 = sshrl.u32 %s747, 5
              // While loop
              $region49: #{tpu_custom_call.1} parent=47 // loop_pre_header
                _
              $region50: #{tpu_custom_call.1} parent=47 // loop_header
                %s762 = sphi 0, %s764
                %p763 = scmp.ge.s32.totalorder %s762, %s760
                %s767 = sphi 0, %s836
                %s768 = sphi %s740, %s839
                %s769 = sphi %s751, %s840
              $region51: #{tpu_custom_call.1} parent=47 // loop_header_branch
                %766 = sbr.rel (%p763) target = $region55
              $region52: #{tpu_custom_call.1} parent=47 // loop_body
                %v770 = vld [vmem:[%s768] sm:$0xf]
                %771 = vst [vmem:[%s769] sm:$0xf] %v770
                %v772 = vld [vmem:[%s768 + $0x4] sm:$0xf]
                %773 = vst [vmem:[%s769 + $0x4] sm:$0xf] %v772
                %v774 = vld [vmem:[%s768 + $0x8] sm:$0xf]
                %775 = vst [vmem:[%s769 + $0x8] sm:$0xf] %v774
                %v776 = vld [vmem:[%s768 + $0xc] sm:$0xf]
                %777 = vst [vmem:[%s769 + $0xc] sm:$0xf] %v776
                %v778 = vld [vmem:[%s768 + $0x10] sm:$0xf]
                %779 = vst [vmem:[%s769 + $0x10] sm:$0xf] %v778
                %v780 = vld [vmem:[%s768 + $0x14] sm:$0xf]
                %781 = vst [vmem:[%s769 + $0x14] sm:$0xf] %v780
                %v782 = vld [vmem:[%s768 + $0x18] sm:$0xf]
                %783 = vst [vmem:[%s769 + $0x18] sm:$0xf] %v782
                %v784 = vld [vmem:[%s768 + $0x1c] sm:$0xf]
                %785 = vst [vmem:[%s769 + $0x1c] sm:$0xf] %v784
                %v786 = vld [vmem:[%s768 + $0x20] sm:$0xf]
                %787 = vst [vmem:[%s769 + $0x20] sm:$0xf] %v786
                %v788 = vld [vmem:[%s768 + $0x24] sm:$0xf]
                %789 = vst [vmem:[%s769 + $0x24] sm:$0xf] %v788
                %v790 = vld [vmem:[%s768 + $0x28] sm:$0xf]
                %791 = vst [vmem:[%s769 + $0x28] sm:$0xf] %v790
                %v792 = vld [vmem:[%s768 + $0x2c] sm:$0xf]
                %793 = vst [vmem:[%s769 + $0x2c] sm:$0xf] %v792
                %v794 = vld [vmem:[%s768 + $0x30] sm:$0xf]
                %795 = vst [vmem:[%s769 + $0x30] sm:$0xf] %v794
                %v796 = vld [vmem:[%s768 + $0x34] sm:$0xf]
                %797 = vst [vmem:[%s769 + $0x34] sm:$0xf] %v796
                %v798 = vld [vmem:[%s768 + $0x38] sm:$0xf]
                %799 = vst [vmem:[%s769 + $0x38] sm:$0xf] %v798
                %v800 = vld [vmem:[%s768 + $0x3c] sm:$0xf]
                %801 = vst [vmem:[%s769 + $0x3c] sm:$0xf] %v800
                %v802 = vld [vmem:[%s768 + $0x40] sm:$0xf]
                %803 = vst [vmem:[%s769 + $0x40] sm:$0xf] %v802
                %v804 = vld [vmem:[%s768 + $0x44] sm:$0xf]
                %805 = vst [vmem:[%s769 + $0x44] sm:$0xf] %v804
                %v806 = vld [vmem:[%s768 + $0x48] sm:$0xf]
                %807 = vst [vmem:[%s769 + $0x48] sm:$0xf] %v806
                %v808 = vld [vmem:[%s768 + $0x4c] sm:$0xf]
                %809 = vst [vmem:[%s769 + $0x4c] sm:$0xf] %v808
                %v810 = vld [vmem:[%s768 + $0x50] sm:$0xf]
                %811 = vst [vmem:[%s769 + $0x50] sm:$0xf] %v810
                %v812 = vld [vmem:[%s768 + $0x54] sm:$0xf]
                %813 = vst [vmem:[%s769 + $0x54] sm:$0xf] %v812
                %v814 = vld [vmem:[%s768 + $0x58] sm:$0xf]
                %815 = vst [vmem:[%s769 + $0x58] sm:$0xf] %v814
                %v816 = vld [vmem:[%s768 + $0x5c] sm:$0xf]
                %817 = vst [vmem:[%s769 + $0x5c] sm:$0xf] %v816
                %v818 = vld [vmem:[%s768 + $0x60] sm:$0xf]
                %819 = vst [vmem:[%s769 + $0x60] sm:$0xf] %v818
                %v820 = vld [vmem:[%s768 + $0x64] sm:$0xf]
                %821 = vst [vmem:[%s769 + $0x64] sm:$0xf] %v820
                %v822 = vld [vmem:[%s768 + $0x68] sm:$0xf]
                %823 = vst [vmem:[%s769 + $0x68] sm:$0xf] %v822
                %v824 = vld [vmem:[%s768 + $0x6c] sm:$0xf]
                %825 = vst [vmem:[%s769 + $0x6c] sm:$0xf] %v824
                %v826 = vld [vmem:[%s768 + $0x70] sm:$0xf]
                %827 = vst [vmem:[%s769 + $0x70] sm:$0xf] %v826
                %v828 = vld [vmem:[%s768 + $0x74] sm:$0xf]
                %829 = vst [vmem:[%s769 + $0x74] sm:$0xf] %v828
                %v830 = vld [vmem:[%s768 + $0x78] sm:$0xf]
                %831 = vst [vmem:[%s769 + $0x78] sm:$0xf] %v830
                %v832 = vld [vmem:[%s768 + $0x7c] sm:$0xf]
                %833 = vst [vmem:[%s769 + $0x7c] sm:$0xf] %v832
                %s834 = sadd.s32 1, %s767
                %p835 = scmp.ge.s32.totalorder %s834, %s760
                %s836 = scalar_select %p835, 0, %s834
                %s837 = smul.u32 %s836, 128
                %s838 = smul.u32 %s836, 128
                %s839 = scalar_lea.vmem %s740, %s837 [#allocation2]
                %s840 = scalar_lea.vmem %s751, %s838
              $region53: #{tpu_custom_call.1} parent=47 // loop_footer
                %s764 = sadd.s32 %s762, 1
              $region54: #{tpu_custom_call.1} parent=47 // loop_footer_branch
                %761 = sbr.rel target = $region50
              $region55: #{tpu_custom_call.1} parent=47 // loop_exit
                _
              %s841 = sshrl.u32 %s747, 5
              %s842 = sand.u32 %s747, 31
              %s843 = smul.u32 %s841, 32
              %s844 = smul.u32 4, %s843
              %s845 = scalar_lea.vmem %s740, %s844 [#allocation2]
              %s846 = smul.u32 4, %s843
              %s847 = scalar_lea.vmem %s751, %s846
              // While loop
              $region56: #{tpu_custom_call.1} parent=47 // loop_pre_header
                _
              $region57: #{tpu_custom_call.1} parent=47 // loop_header
                %s849 = sphi 0, %s851
                %p850 = scmp.ge.s32.totalorder %s849, %s842
                %s854 = sphi 0, %s861
                %s855 = sphi %s845, %s864
                %s856 = sphi %s847, %s865
              $region58: #{tpu_custom_call.1} parent=47 // loop_header_branch
                %853 = sbr.rel (%p850) target = $region62
              $region59: #{tpu_custom_call.1} parent=47 // loop_body
                %v857 = vld [vmem:[%s855] sm:$0xf]
                %858 = vst [vmem:[%s856] sm:$0xf] %v857
                %s859 = sadd.s32 1, %s854
                %p860 = scmp.ge.s32.totalorder %s859, %s842
                %s861 = scalar_select %p860, 0, %s859
                %s862 = smul.u32 %s861, 4
                %s863 = smul.u32 %s861, 4
                %s864 = scalar_lea.vmem %s845, %s862 [#allocation2]
                %s865 = scalar_lea.vmem %s847, %s863
              $region60: #{tpu_custom_call.1} parent=47 // loop_footer
                %s851 = sadd.s32 %s849, 1
              $region61: #{tpu_custom_call.1} parent=47 // loop_footer_branch
                %848 = sbr.rel target = $region57
              $region62: #{tpu_custom_call.1} parent=47 // loop_exit
                _
            $region48: #{tpu_custom_call.1} parent=39 // pred_fallthru
              _
          $region40: #{tpu_custom_call.1} parent=35 // pred_fallthru
            _
          %975 = vnop
        $region36: #{tpu_custom_call.1} parent=31 // pred_fallthru
          _
      $region32: #{tpu_custom_call.1} parent=5 // pred_fallthru
        _
      %p976 = scmp.le.s32.totalorder 2, %s9
      // Predicated region
      $region81: #{tpu_custom_call.1} parent=5 // pred_check
        %p977 = pneg %p976
      $region82: #{tpu_custom_call.1} parent=5 // pred_check_branch
        %979 = sbr.rel (%p977) target = $region84
      $region83: #{tpu_custom_call.1} parent=5 // pred_region
        %s980 = ssub.s32 %s9, 2
        // Predicated region
        $region85: #{tpu_custom_call.1} parent=83 // pred_check
          %p981 = pneg %p106
        $region86: #{tpu_custom_call.1} parent=83 // pred_check_branch
          %983 = sbr.rel (%p981) target = $region88
        $region87: #{tpu_custom_call.1} parent=83 // pred_region
          %s984 = sand.u32 %s91, 1
          %s985 = sand.u32 %s91, 1
          %s986 = smul.addr %s985, 128
          %s987 = scalar_lea.vmem [#allocation2], %s986
        $region88: #{tpu_custom_call.1} parent=83 // pred_fallthru
          _
      $region84: #{tpu_custom_call.1} parent=5 // pred_fallthru
        _
    $region6: #{tpu_custom_call.1} parent=1 // loop_footer
      %s13 = sadd.s32 1, %s9
    $region7: #{tpu_custom_call.1} parent=1 // loop_footer_branch
      %8 = sbr.rel target = $region3
    $region8: #{tpu_custom_call.1} parent=1 // loop_exit
      _

</llo_original>
